<compile_context>
chip_gen: v5e
topology: v5e:2x2
jax: 0.10.0
libtpu: 0.0.40
codegen_flags: <defaults>
</compile_context>

<pallas_src>
import jax
import jax.numpy as jnp
from jax.experimental import pallas as pl
from jax.experimental.pallas import tpu as pltpu


def _rcnn_gru_kernel(xw_ref, wfused_ref, bfused_ref, whcat_ref, bhn_ref,
                     fcwh_ref, fcwc_ref, fcb_ref, o_ref,
                     h_state, max_acc, gates_s):
    # xw_ref:     [TP, Bt, W*E] bf16  streamed window tiles of the embedding
    # wfused_ref: [W*E, 3H+C]  bf16   fused (conv ∘ input-gate) weights: [r|z|n|conv]
    # bfused_ref: [1, 3H+C]    f32    fused biases (conv bias propagated into gates)
    # whcat_ref:  [H, 3H]      f32    GRU hidden weights [Whr^T | Whz^T | Whn^T]
    # bhn_ref:    [1, H]       f32    b_hn (stays inside the r*(...) term)
    # fcwh_ref:   [1, H], fcwc_ref: [1, C], fcb_ref: [1, 1]   final Linear
    # o_ref:      [Bt, 1]      f32    logits
    # scratch:    h_state [Bt,H], max_acc [Bt,C], gates_s [TP,Bt,3H]
    pi = pl.program_id(1)
    TP, Bt, WE = xw_ref.shape
    NG = gates_s.shape[-1]          # 3H
    H = NG // 3
    C = max_acc.shape[-1]

    @pl.when(pi == 0)
    def _init():
        h_state[...] = jnp.zeros(h_state.shape, jnp.float32)
        max_acc[...] = jnp.full(max_acc.shape, -jnp.inf, jnp.float32)

    # ---- ONE fused MXU matmul (K=W*E, N=3H+C): conv channels + all gate inputs ----
    xw = xw_ref[...].reshape(TP * Bt, WE)                                   # bf16
    fused = (jnp.dot(xw, wfused_ref[...], preferred_element_type=jnp.float32)
             + bfused_ref[...])                                             # [TP*Bt, 3H+C] f32

    # gate inputs -> single merged scratch (lane-offset-0 slice, one store)
    gates_s[...] = fused[:, :NG].reshape(TP, Bt, NG)
    # conv channels -> streaming max for the residual branch
    conv = fused[:, NG:].reshape(TP, Bt, C)
    max_acc[...] = jnp.maximum(max_acc[...], jnp.max(conv, axis=0))

    whcat = whcat_ref[...]
    bhn = bhn_ref[...]

    # ---- serial GRU recurrence: one fused [Bt,H]x[H,3H] matmul per timestep ----
    def gru_step(t, h):
        gh = jnp.dot(h, whcat, preferred_element_type=jnp.float32)         # [Bt, 3H]
        xg = gates_s[t]                                                     # [Bt, 3H]
        r = jax.nn.sigmoid(xg[:, :H] + gh[:, :H])
        z = jax.nn.sigmoid(xg[:, H:2 * H] + gh[:, H:2 * H])
        n = jnp.tanh(xg[:, 2 * H:] + r * (gh[:, 2 * H:] + bhn))
        return (1.0 - z) * n + z * h

    unroll = True if TP <= 16 else 4
    h_state[...] = jax.lax.fori_loop(0, TP, gru_step, h_state[...], unroll=unroll)

    # ---- finalize on the last window block: fc(cat([h_last, values])) on the VPU ----
    @pl.when(pi == pl.num_programs(1) - 1)
    def _finalize():
        logit = (jnp.sum(h_state[...] * fcwh_ref[...], axis=-1, keepdims=True)
                 + jnp.sum(max_acc[...] * fcwc_ref[...], axis=-1, keepdims=True)
                 + fcb_ref[...])
        o_ref[...] = logit


def _vmem_limit_bytes():
    """~3/4 of physical VMEM, capped at 100 MiB (v7x ~48 MiB, v5e/v6e ~96 MiB)."""
    cap = 64 * 1024 * 1024
    try:
        info = pltpu.get_tpu_info()
        cap = (getattr(info, "vmem_capacity_bytes", None)
               or getattr(info, "vmem_size_bytes", None) or cap)
    except Exception:
        pass
    return int(min(100 * 1024 * 1024, (cap * 3) // 4))


def rcnn_gru_forward(x_tokens, emb_table, conv_w, conv_b,
                     w_ih, w_hh, b_ih, b_hh, fc_w, fc_b,
                     *, window_tile=None, batch_tile=None):
    """RCNN forward (module=GRU, num_layers=1, bidirectional=False, residual=True,
    eval mode: dropout is identity)."""
    B, L = x_tokens.shape
    E = emb_table.shape[1]
    C, _, W = conv_w.shape
    H = w_hh.shape[1]
    assert w_ih.shape == (3 * H, C) and w_hh.shape == (3 * H, H)
    P = L // W
    assert P * W == L, "sequence length must be a multiple of window_size"

    TP = window_tile or P               # windows per grid step
    assert P % TP == 0
    if batch_tile is None:
        half = B // 2                   # give v7x's 2nd TensorCore work when possible
        Bt = half if (B % 2 == 0 and half % 16 == 0) else B
    else:
        Bt = batch_tile
    # bf16 sublane packing is 16 -> misaligned Bt would force per-step relayouts
    assert B % Bt == 0 and (Bt == B or Bt % 16 == 0)

    # ---- JAX glue: embedding gather + window flattening + fused weight prep ----
    # TODO(synk): fold the 257xE embedding gather into the kernel (per-window
    # lookup tables [W, 257, 3H+C] + streamed int32 tokens) to cut streamed HBM
    # bytes ~2E x; kept in XLA because the vectorized in-kernel token gather
    # does not lower portably across generations.
    tok_pbw = x_tokens.reshape(B, P, W).transpose(1, 0, 2)                  # [P, B, W]
    x_win = emb_table.astype(jnp.bfloat16)[tok_pbw].reshape(P, B, W * E)    # [P,B,W*E] bf16

    # conv weight [C, E, W] -> matmul matrix [W*E, C] with row index w*E + e (f32)
    w_mat = jnp.transpose(conv_w, (2, 1, 0)).reshape(W * E, C).astype(jnp.float32)

    w_ir, w_iz, w_in_ = jnp.split(w_ih.astype(jnp.float32), 3, axis=0)      # [H, C] each
    w_hr, w_hz, w_hn = jnp.split(w_hh.astype(jnp.float32), 3, axis=0)       # [H, H] each
    b_ir, b_iz, b_in_ = jnp.split(b_ih.astype(jnp.float32), 3)
    b_hr, b_hz, b_hn = jnp.split(b_hh.astype(jnp.float32), 3)
    conv_b32 = conv_b.astype(jnp.float32)

    # Fused input weights [W*E, 3H+C] = [conv∘Wr | conv∘Wz | conv∘Wn | conv].
    # Products in f32 FIRST, then a single bf16 cast (keeps rounding error small).
    w_fused = jnp.concatenate(
        [w_mat @ w_ir.T, w_mat @ w_iz.T, w_mat @ w_in_.T, w_mat],
        axis=1).astype(jnp.bfloat16)                                        # [W*E, 3H+C]
    # Fused biases: conv bias propagated through each gate; r/z hidden biases
    # folded; the n-gate hidden bias b_hn stays separate (inside r*(...)).
    b_fused = jnp.concatenate(
        [conv_b32 @ w_ir.T + b_ir + b_hr,
         conv_b32 @ w_iz.T + b_iz + b_hz,
         conv_b32 @ w_in_.T + b_in_,
         conv_b32], axis=0).reshape(1, 3 * H + C).astype(jnp.float32)

    # Fused hidden-to-hidden weights [H, 3H] (right-multiply layout).
    wh_cat = jnp.concatenate([w_hr.T, w_hz.T, w_hn.T], axis=1).astype(jnp.float32)
    bhn = b_hn.reshape(1, H).astype(jnp.float32)

    # fc over cat([rnn_out[-1] (H), conv max (C)]); pre-split -> lane-aligned VPU reduce.
    fcw_h = fc_w[:, :H].reshape(1, H).astype(jnp.float32)
    fcw_c = fc_w[:, H:].reshape(1, C).astype(jnp.float32)
    fcb = fc_b.reshape(1, 1).astype(jnp.float32)

    def resident(arr):
        return pl.BlockSpec(arr.shape, lambda bi, pi: (0,) * arr.ndim)

    grid = (B // Bt, P // TP)   # (parallel batch blocks, sequential window blocks)

    out = pl.pallas_call(
        _rcnn_gru_kernel,
        out_shape=jax.ShapeDtypeStruct((B, 1), jnp.float32),
        grid_spec=pltpu.PrefetchScalarGridSpec(
            num_scalar_prefetch=0,
            grid=grid,
            in_specs=[
                # streamed, double-buffered bf16 window tiles
                pl.BlockSpec((TP, Bt, W * E), lambda bi, pi: (pi, bi, 0)),
                # VMEM-resident weights (same block every grid step)
                resident(w_fused), resident(b_fused), resident(wh_cat),
                resident(bhn), resident(fcw_h), resident(fcw_c), resident(fcb),
            ],
            out_specs=pl.BlockSpec((Bt, 1), lambda bi, pi: (bi, 0)),
            scratch_shapes=[
                pltpu.VMEM((Bt, H), jnp.float32),          # GRU hidden state carry
                pltpu.VMEM((Bt, C), jnp.float32),          # running conv max (residual)
                pltpu.VMEM((TP, Bt, 3 * H), jnp.float32),  # merged r|z|n gate inputs
            ]),
        compiler_params=pltpu.CompilerParams(
            # window axis carries the recurrence / max accumulator -> "arbitrary";
            # batch blocks are independent -> "parallel" (shards over v7x's 2 TCs).
            dimension_semantics=("parallel", "arbitrary"),
            vmem_limit_bytes=_vmem_limit_bytes()),
    )(x_win, w_fused, b_fused, wh_cat, bhn, fcw_h, fcw_c, fcb)
    return out[:, 0]                                       # squeeze(1) -> [B]


def rcnn_gru_reference(x_tokens, emb_table, conv_w, conv_b,
                       w_ih, w_hh, b_ih, b_hh, fc_w, fc_b):
    """Pure-JAX f32 reference mirroring the PyTorch forward (GRU, 1 layer,
    unidirectional, residual=True, eval mode)."""
    C, E, W = conv_w.shape
    H = w_hh.shape[1]
    B = x_tokens.shape[0]
    emb = emb_table[x_tokens]                                   # [B, L, E]
    conv_in = jnp.transpose(emb, (0, 2, 1))                     # [B, E, L]
    conv_out = jax.lax.conv_general_dilated(
        conv_in, conv_w, window_strides=(W,), padding="VALID",
        dimension_numbers=("NCH", "OIH", "NCH"))                # [B, C, P]
    conv_out = conv_out + conv_b[None, :, None]
    values = jnp.max(conv_out, axis=-1)                         # [B, C]
    seq = jnp.transpose(conv_out, (2, 0, 1))                    # [P, B, C]

    def cell(h, x_t):
        gi = x_t @ w_ih.T + b_ih
        gh = h @ w_hh.T + b_hh
        i_r, i_z, i_n = jnp.split(gi, 3, axis=-1)
        h_r, h_z, h_n = jnp.split(gh, 3, axis=-1)
        r = jax.nn.sigmoid(i_r + h_r)
        z = jax.nn.sigmoid(i_z + h_z)
        n = jnp.tanh(i_n + r * h_n)
        return (1.0 - z) * n + z * h, None

    h_last, _ = jax.lax.scan(cell, jnp.zeros((B, H), jnp.float32), seq)
    fc_in = jnp.concatenate([h_last, values], axis=-1)          # [B, H + C]
    return (fc_in @ fc_w.T + fc_b)[:, 0]                        # [B]


if __name__ == "__main__":
    # Small shapes consistent with the module: embed_dim E=8, out_channels C=4,
    # window_size W=16, hidden_size H=32, batch B=2, seq L=128 (P=8 windows);
    # module=GRU, num_layers=1, bidirectional=False, residual=True.
    # TODO(synk): LSTM/plain-RNN cells, num_layers>1 and bidirectional=True are
    # not implemented (same kernel structure, different/extra recurrence passes).
    B, E, C, W, P, H = 2, 8, 4, 16, 8, 32
    L = P * W

    key = jax.random.PRNGKey(0)
    ks = jax.random.split(key, 10)
    emb_table = jax.random.normal(ks[0], (257, E), jnp.float32) * 0.5
    conv_w = jax.random.normal(ks[1], (C, E, W), jnp.float32) * 0.1
    conv_b = jax.random.normal(ks[2], (C,), jnp.float32) * 0.1
    w_ih = jax.random.normal(ks[3], (3 * H, C), jnp.float32) * 0.2
    w_hh = jax.random.normal(ks[4], (3 * H, H), jnp.float32) * 0.2
    b_ih = jax.random.normal(ks[5], (3 * H,), jnp.float32) * 0.1
    b_hh = jax.random.normal(ks[6], (3 * H,), jnp.float32) * 0.1
    fc_w = jax.random.normal(ks[7], (1, H + C), jnp.float32) * 0.1
    fc_b = jax.random.normal(ks[8], (1,), jnp.float32) * 0.1
    x_tokens = jax.random.randint(ks[9], (B, L), 0, 257, dtype=jnp.int32)

    out = jax.block_until_ready(
        rcnn_gru_forward(x_tokens, emb_table, conv_w, conv_b,
                         w_ih, w_hh, b_ih, b_hh, fc_w, fc_b,
                         window_tile=4))                 # 2 window blocks -> exercises the carry
    ref = jax.block_until_ready(
        rcnn_gru_reference(x_tokens, emb_table, conv_w, conv_b,
                           w_ih, w_hh, b_ih, b_hh, fc_w, fc_b))

    assert out.shape == (B,), out.shape
    # bf16 MXU operands / fused bf16 weights vs the pure-f32 reference -> loose-ish tolerance
    assert jnp.allclose(out, ref, atol=3e-2, rtol=3e-2), (out, ref)
    print("KERNEL_OK")
</pallas_src>

<mosaic_0001>
module attributes {stable_mosaic.version = 11 : i64} {
  func.func @_rcnn_gru_kernel(%arg0: i32, %arg1: i32, %arg2: memref<4x2x128xbf16, #tpu.memory_space<vmem>>, %arg3: memref<128x100xbf16, #tpu.memory_space<vmem>>, %arg4: memref<1x100xf32, #tpu.memory_space<vmem>>, %arg5: memref<32x96xf32, #tpu.memory_space<vmem>>, %arg6: memref<1x32xf32, #tpu.memory_space<vmem>>, %arg7: memref<1x32xf32, #tpu.memory_space<vmem>>, %arg8: memref<1x4xf32, #tpu.memory_space<vmem>>, %arg9: memref<1x1xf32, #tpu.memory_space<vmem>>, %arg10: memref<2x1xf32, #tpu.memory_space<vmem>>, %arg11: memref<2x32xf32, #tpu.memory_space<vmem>>, %arg12: memref<2x4xf32, #tpu.memory_space<vmem>>, %arg13: memref<4x2x96xf32, #tpu.memory_space<vmem>>) attributes {dimension_semantics = [#tpu.dimension_semantics<parallel>, #tpu.dimension_semantics<arbitrary>], iteration_bounds = array<i64: 1, 2>, scalar_prefetch = 0 : i64, scratch_operands = 3 : i64, tpu.core_type = #tpu.core_type<tc>, window_params = [{transform_indices = @transform_0, window_bounds = array<i64: 4, 2, 128>}, {pipeline_mode = #tpu.pipeline_mode<synchronous>, transform_indices = @transform_1, window_bounds = array<i64: 128, 100>}, {pipeline_mode = #tpu.pipeline_mode<synchronous>, transform_indices = @transform_2, window_bounds = array<i64: 1, 100>}, {pipeline_mode = #tpu.pipeline_mode<synchronous>, transform_indices = @transform_3, window_bounds = array<i64: 32, 96>}, {pipeline_mode = #tpu.pipeline_mode<synchronous>, transform_indices = @transform_4, window_bounds = array<i64: 1, 32>}, {pipeline_mode = #tpu.pipeline_mode<synchronous>, transform_indices = @transform_5, window_bounds = array<i64: 1, 32>}, {pipeline_mode = #tpu.pipeline_mode<synchronous>, transform_indices = @transform_6, window_bounds = array<i64: 1, 4>}, {pipeline_mode = #tpu.pipeline_mode<synchronous>, transform_indices = @transform_7, window_bounds = array<i64: 1, 1>}, {transform_indices = @transform_8, window_bounds = array<i64: 2, 1>}]} {
    %c0_i32 = arith.constant 0 : i32
    %0 = arith.cmpi eq, %arg1, %c0_i32 : i32
    %1 = arith.extui %0 : i1 to i32
    %c0_i32_0 = arith.constant 0 : i32
    %2 = arith.cmpi ne, %1, %c0_i32_0 : i32
    scf.if %2 {
      %cst_50 = arith.constant 0.000000e+00 : f32
      %154 = vector.broadcast %cst_50 : f32 to vector<2x32xf32>
      %c0_51 = arith.constant 0 : index
      %c0_52 = arith.constant 0 : index
      %155 = vector.load %arg11[%c0_51, %c0_52] : memref<2x32xf32, #tpu.memory_space<vmem>>, vector<2x32xf32>
      tpu.vector_store %arg11[%c0_51, %c0_52], %154 {strides = array<i32>} : memref<2x32xf32, #tpu.memory_space<vmem>>, vector<2x32xf32>,
      %cst_53 = arith.constant 0xFF800000 : f32
      %156 = vector.broadcast %cst_53 : f32 to vector<2x4xf32>
      %c0_54 = arith.constant 0 : index
      %c0_55 = arith.constant 0 : index
      %157 = vector.load %arg12[%c0_54, %c0_55] : memref<2x4xf32, #tpu.memory_space<vmem>>, vector<2x4xf32>
      tpu.vector_store %arg12[%c0_54, %c0_55], %156 {strides = array<i32>} : memref<2x4xf32, #tpu.memory_space<vmem>>, vector<2x4xf32>,
    } else {
    }
    %c0 = arith.constant 0 : index
    %c0_1 = arith.constant 0 : index
    %c0_2 = arith.constant 0 : index
    %3 = vector.load %arg2[%c0, %c0_1, %c0_2] : memref<4x2x128xbf16, #tpu.memory_space<vmem>>, vector<4x2x128xbf16>
    %4 = vector.shape_cast %3 : vector<4x2x128xbf16> to vector<8x128xbf16>
    %c0_3 = arith.constant 0 : index
    %c0_4 = arith.constant 0 : index
    %5 = vector.load %arg3[%c0_3, %c0_4] : memref<128x100xbf16, #tpu.memory_space<vmem>>, vector<128x100xbf16>
    %cst = arith.constant dense<0.000000e+00> : vector<8x100xf32>
    %6 = tpu.matmul %4, %5, %cst {dimension_numbers = #tpu.dot_dimension_numbers<[1], [0], [0], [1], [0, 0, 1, 1], [], []>} : vector<8x128xbf16>, vector<128x100xbf16>, vector<8x100xf32> -> vector<8x100xf32>
    %c0_5 = arith.constant 0 : index
    %c0_6 = arith.constant 0 : index
    %7 = vector.load %arg4[%c0_5, %c0_6] : memref<1x100xf32, #tpu.memory_space<vmem>>, vector<1x100xf32>
    %8 = vector.broadcast %7 : vector<1x100xf32> to vector<8x100xf32>
    %9 = arith.addf %6, %8 : vector<8x100xf32>
    %10 = vector.extract_strided_slice %9 {offsets = [0, 0], sizes = [8, 96], strides = [1, 1]} : vector<8x100xf32> to vector<8x96xf32>
    %11 = vector.shape_cast %10 : vector<8x96xf32> to vector<4x2x96xf32>
    %c0_7 = arith.constant 0 : index
    %c0_8 = arith.constant 0 : index
    %c0_9 = arith.constant 0 : index
    %12 = vector.load %arg13[%c0_7, %c0_8, %c0_9] : memref<4x2x96xf32, #tpu.memory_space<vmem>>, vector<4x2x96xf32>
    tpu.vector_store %arg13[%c0_7, %c0_8, %c0_9], %11 {strides = array<i32>} : memref<4x2x96xf32, #tpu.memory_space<vmem>>, vector<4x2x96xf32>,
    %13 = vector.extract_strided_slice %9 {offsets = [0, 96], sizes = [8, 4], strides = [1, 1]} : vector<8x100xf32> to vector<8x4xf32>
    %14 = vector.shape_cast %13 : vector<8x4xf32> to vector<4x2x4xf32>
    %c0_10 = arith.constant 0 : index
    %c0_11 = arith.constant 0 : index
    %15 = vector.load %arg12[%c0_10, %c0_11] : memref<2x4xf32, #tpu.memory_space<vmem>>, vector<2x4xf32>
    %cst_12 = arith.constant dense<0xFF800000> : vector<2x4xf32>
    %16 = vector.multi_reduction <maximumf>, %14, %cst_12 [0] : vector<4x2x4xf32> to vector<2x4xf32>
    %17 = arith.maximumf %15, %16 : vector<2x4xf32>
    %c0_13 = arith.constant 0 : index
    %c0_14 = arith.constant 0 : index
    %18 = vector.load %arg12[%c0_13, %c0_14] : memref<2x4xf32, #tpu.memory_space<vmem>>, vector<2x4xf32>
    tpu.vector_store %arg12[%c0_13, %c0_14], %17 {strides = array<i32>} : memref<2x4xf32, #tpu.memory_space<vmem>>, vector<2x4xf32>,
    %c0_15 = arith.constant 0 : index
    %c0_16 = arith.constant 0 : index
    %19 = vector.load %arg5[%c0_15, %c0_16] : memref<32x96xf32, #tpu.memory_space<vmem>>, vector<32x96xf32>
    %c0_17 = arith.constant 0 : index
    %c0_18 = arith.constant 0 : index
    %20 = vector.load %arg6[%c0_17, %c0_18] : memref<1x32xf32, #tpu.memory_space<vmem>>, vector<1x32xf32>
    %c0_19 = arith.constant 0 : index
    %c0_20 = arith.constant 0 : index
    %21 = vector.load %arg11[%c0_19, %c0_20] : memref<2x32xf32, #tpu.memory_space<vmem>>, vector<2x32xf32>
    %c0_i32_21 = arith.constant 0 : i32
    %cst_22 = arith.constant dense<0.000000e+00> : vector<2x96xf32>
    %22 = tpu.matmul %21, %19, %cst_22 {dimension_numbers = #tpu.dot_dimension_numbers<[1], [0], [0], [1], [0, 0, 1, 1], [], []>} : vector<2x32xf32>, vector<32x96xf32>, vector<2x96xf32> -> vector<2x96xf32>
    %23 = arith.index_cast %c0_i32_21 : i32 to index
    %c0_23 = arith.constant 0 : index
    %c0_24 = arith.constant 0 : index
    %24 = vector.load %arg13[%23, %c0_23, %c0_24] : memref<4x2x96xf32, #tpu.memory_space<vmem>>, vector<1x2x96xf32>
    %25 = vector.shape_cast %24 : vector<1x2x96xf32> to vector<2x96xf32>
    %26 = vector.extract_strided_slice %25 {offsets = [0, 0], sizes = [2, 32], strides = [1, 1]} : vector<2x96xf32> to vector<2x32xf32>
    %27 = vector.extract_strided_slice %22 {offsets = [0, 0], sizes = [2, 32], strides = [1, 1]} : vector<2x96xf32> to vector<2x32xf32>
    %28 = arith.addf %26, %27 : vector<2x32xf32>
    %29 = arith.negf %28 : vector<2x32xf32>
    %30 = math.exp %29 : vector<2x32xf32>
    %cst_25 = arith.constant 1.000000e+00 : f32
    %31 = vector.broadcast %cst_25 : f32 to vector<2x32xf32>
    %32 = arith.addf %31, %30 : vector<2x32xf32>
    %33 = arith.divf %31, %32 : vector<2x32xf32>
    %34 = vector.extract_strided_slice %25 {offsets = [0, 32], sizes = [2, 32], strides = [1, 1]} : vector<2x96xf32> to vector<2x32xf32>
    %35 = vector.extract_strided_slice %22 {offsets = [0, 32], sizes = [2, 32], strides = [1, 1]} : vector<2x96xf32> to vector<2x32xf32>
    %36 = arith.addf %34, %35 : vector<2x32xf32>
    %37 = arith.negf %36 : vector<2x32xf32>
    %38 = math.exp %37 : vector<2x32xf32>
    %cst_26 = arith.constant 1.000000e+00 : f32
    %39 = vector.broadcast %cst_26 : f32 to vector<2x32xf32>
    %40 = arith.addf %39, %38 : vector<2x32xf32>
    %41 = arith.divf %39, %40 : vector<2x32xf32>
    %42 = vector.extract_strided_slice %25 {offsets = [0, 64], sizes = [2, 32], strides = [1, 1]} : vector<2x96xf32> to vector<2x32xf32>
    %43 = vector.extract_strided_slice %22 {offsets = [0, 64], sizes = [2, 32], strides = [1, 1]} : vector<2x96xf32> to vector<2x32xf32>
    %44 = vector.broadcast %20 : vector<1x32xf32> to vector<2x32xf32>
    %45 = arith.addf %43, %44 : vector<2x32xf32>
    %46 = arith.mulf %33, %45 : vector<2x32xf32>
    %47 = arith.addf %42, %46 : vector<2x32xf32>
    %48 = math.tanh %47 : vector<2x32xf32>
    %cst_27 = arith.constant 1.000000e+00 : f32
    %49 = vector.broadcast %cst_27 : f32 to vector<2x32xf32>
    %50 = arith.subf %49, %41 : vector<2x32xf32>
    %51 = arith.mulf %50, %48 : vector<2x32xf32>
    %52 = arith.mulf %41, %21 : vector<2x32xf32>
    %53 = arith.addf %51, %52 : vector<2x32xf32>
    %c1_i32 = arith.constant 1 : i32
    %cst_28 = arith.constant dense<0.000000e+00> : vector<2x96xf32>
    %54 = tpu.matmul %53, %19, %cst_28 {dimension_numbers = #tpu.dot_dimension_numbers<[1], [0], [0], [1], [0, 0, 1, 1], [], []>} : vector<2x32xf32>, vector<32x96xf32>, vector<2x96xf32> -> vector<2x96xf32>
    %55 = arith.index_cast %c1_i32 : i32 to index
    %c0_29 = arith.constant 0 : index
    %c0_30 = arith.constant 0 : index
    %56 = vector.load %arg13[%55, %c0_29, %c0_30] : memref<4x2x96xf32, #tpu.memory_space<vmem>>, vector<1x2x96xf32>
    %57 = vector.shape_cast %56 : vector<1x2x96xf32> to vector<2x96xf32>
    %58 = vector.extract_strided_slice %57 {offsets = [0, 0], sizes = [2, 32], strides = [1, 1]} : vector<2x96xf32> to vector<2x32xf32>
    %59 = vector.extract_strided_slice %54 {offsets = [0, 0], sizes = [2, 32], strides = [1, 1]} : vector<2x96xf32> to vector<2x32xf32>
    %60 = arith.addf %58, %59 : vector<2x32xf32>
    %61 = arith.negf %60 : vector<2x32xf32>
    %62 = math.exp %61 : vector<2x32xf32>
    %cst_31 = arith.constant 1.000000e+00 : f32
    %63 = vector.broadcast %cst_31 : f32 to vector<2x32xf32>
    %64 = arith.addf %63, %62 : vector<2x32xf32>
    %65 = arith.divf %63, %64 : vector<2x32xf32>
    %66 = vector.extract_strided_slice %57 {offsets = [0, 32], sizes = [2, 32], strides = [1, 1]} : vector<2x96xf32> to vector<2x32xf32>
    %67 = vector.extract_strided_slice %54 {offsets = [0, 32], sizes = [2, 32], strides = [1, 1]} : vector<2x96xf32> to vector<2x32xf32>
    %68 = arith.addf %66, %67 : vector<2x32xf32>
    %69 = arith.negf %68 : vector<2x32xf32>
    %70 = math.exp %69 : vector<2x32xf32>
    %cst_32 = arith.constant 1.000000e+00 : f32
    %71 = vector.broadcast %cst_32 : f32 to vector<2x32xf32>
    %72 = arith.addf %71, %70 : vector<2x32xf32>
    %73 = arith.divf %71, %72 : vector<2x32xf32>
    %74 = vector.extract_strided_slice %57 {offsets = [0, 64], sizes = [2, 32], strides = [1, 1]} : vector<2x96xf32> to vector<2x32xf32>
    %75 = vector.extract_strided_slice %54 {offsets = [0, 64], sizes = [2, 32], strides = [1, 1]} : vector<2x96xf32> to vector<2x32xf32>
    %76 = vector.broadcast %20 : vector<1x32xf32> to vector<2x32xf32>
    %77 = arith.addf %75, %76 : vector<2x32xf32>
    %78 = arith.mulf %65, %77 : vector<2x32xf32>
    %79 = arith.addf %74, %78 : vector<2x32xf32>
    %80 = math.tanh %79 : vector<2x32xf32>
    %cst_33 = arith.constant 1.000000e+00 : f32
    %81 = vector.broadcast %cst_33 : f32 to vector<2x32xf32>
    %82 = arith.subf %81, %73 : vector<2x32xf32>
    %83 = arith.mulf %82, %80 : vector<2x32xf32>
    %84 = arith.mulf %73, %53 : vector<2x32xf32>
    %85 = arith.addf %83, %84 : vector<2x32xf32>
    %c2_i32 = arith.constant 2 : i32
    %cst_34 = arith.constant dense<0.000000e+00> : vector<2x96xf32>
    %86 = tpu.matmul %85, %19, %cst_34 {dimension_numbers = #tpu.dot_dimension_numbers<[1], [0], [0], [1], [0, 0, 1, 1], [], []>} : vector<2x32xf32>, vector<32x96xf32>, vector<2x96xf32> -> vector<2x96xf32>
    %87 = arith.index_cast %c2_i32 : i32 to index
    %c0_35 = arith.constant 0 : index
    %c0_36 = arith.constant 0 : index
    %88 = vector.load %arg13[%87, %c0_35, %c0_36] : memref<4x2x96xf32, #tpu.memory_space<vmem>>, vector<1x2x96xf32>
    %89 = vector.shape_cast %88 : vector<1x2x96xf32> to vector<2x96xf32>
    %90 = vector.extract_strided_slice %89 {offsets = [0, 0], sizes = [2, 32], strides = [1, 1]} : vector<2x96xf32> to vector<2x32xf32>
    %91 = vector.extract_strided_slice %86 {offsets = [0, 0], sizes = [2, 32], strides = [1, 1]} : vector<2x96xf32> to vector<2x32xf32>
    %92 = arith.addf %90, %91 : vector<2x32xf32>
    %93 = arith.negf %92 : vector<2x32xf32>
    %94 = math.exp %93 : vector<2x32xf32>
    %cst_37 = arith.constant 1.000000e+00 : f32
    %95 = vector.broadcast %cst_37 : f32 to vector<2x32xf32>
    %96 = arith.addf %95, %94 : vector<2x32xf32>
    %97 = arith.divf %95, %96 : vector<2x32xf32>
    %98 = vector.extract_strided_slice %89 {offsets = [0, 32], sizes = [2, 32], strides = [1, 1]} : vector<2x96xf32> to vector<2x32xf32>
    %99 = vector.extract_strided_slice %86 {offsets = [0, 32], sizes = [2, 32], strides = [1, 1]} : vector<2x96xf32> to vector<2x32xf32>
    %100 = arith.addf %98, %99 : vector<2x32xf32>
    %101 = arith.negf %100 : vector<2x32xf32>
    %102 = math.exp %101 : vector<2x32xf32>
    %cst_38 = arith.constant 1.000000e+00 : f32
    %103 = vector.broadcast %cst_38 : f32 to vector<2x32xf32>
    %104 = arith.addf %103, %102 : vector<2x32xf32>
    %105 = arith.divf %103, %104 : vector<2x32xf32>
    %106 = vector.extract_strided_slice %89 {offsets = [0, 64], sizes = [2, 32], strides = [1, 1]} : vector<2x96xf32> to vector<2x32xf32>
    %107 = vector.extract_strided_slice %86 {offsets = [0, 64], sizes = [2, 32], strides = [1, 1]} : vector<2x96xf32> to vector<2x32xf32>
    %108 = vector.broadcast %20 : vector<1x32xf32> to vector<2x32xf32>
    %109 = arith.addf %107, %108 : vector<2x32xf32>
    %110 = arith.mulf %97, %109 : vector<2x32xf32>
    %111 = arith.addf %106, %110 : vector<2x32xf32>
    %112 = math.tanh %111 : vector<2x32xf32>
    %cst_39 = arith.constant 1.000000e+00 : f32
    %113 = vector.broadcast %cst_39 : f32 to vector<2x32xf32>
    %114 = arith.subf %113, %105 : vector<2x32xf32>
    %115 = arith.mulf %114, %112 : vector<2x32xf32>
    %116 = arith.mulf %105, %85 : vector<2x32xf32>
    %117 = arith.addf %115, %116 : vector<2x32xf32>
    %c3_i32 = arith.constant 3 : i32
    %cst_40 = arith.constant dense<0.000000e+00> : vector<2x96xf32>
    %118 = tpu.matmul %117, %19, %cst_40 {dimension_numbers = #tpu.dot_dimension_numbers<[1], [0], [0], [1], [0, 0, 1, 1], [], []>} : vector<2x32xf32>, vector<32x96xf32>, vector<2x96xf32> -> vector<2x96xf32>
    %119 = arith.index_cast %c3_i32 : i32 to index
    %c0_41 = arith.constant 0 : index
    %c0_42 = arith.constant 0 : index
    %120 = vector.load %arg13[%119, %c0_41, %c0_42] : memref<4x2x96xf32, #tpu.memory_space<vmem>>, vector<1x2x96xf32>
    %121 = vector.shape_cast %120 : vector<1x2x96xf32> to vector<2x96xf32>
    %122 = vector.extract_strided_slice %121 {offsets = [0, 0], sizes = [2, 32], strides = [1, 1]} : vector<2x96xf32> to vector<2x32xf32>
    %123 = vector.extract_strided_slice %118 {offsets = [0, 0], sizes = [2, 32], strides = [1, 1]} : vector<2x96xf32> to vector<2x32xf32>
    %124 = arith.addf %122, %123 : vector<2x32xf32>
    %125 = arith.negf %124 : vector<2x32xf32>
    %126 = math.exp %125 : vector<2x32xf32>
    %cst_43 = arith.constant 1.000000e+00 : f32
    %127 = vector.broadcast %cst_43 : f32 to vector<2x32xf32>
    %128 = arith.addf %127, %126 : vector<2x32xf32>
    %129 = arith.divf %127, %128 : vector<2x32xf32>
    %130 = vector.extract_strided_slice %121 {offsets = [0, 32], sizes = [2, 32], strides = [1, 1]} : vector<2x96xf32> to vector<2x32xf32>
    %131 = vector.extract_strided_slice %118 {offsets = [0, 32], sizes = [2, 32], strides = [1, 1]} : vector<2x96xf32> to vector<2x32xf32>
    %132 = arith.addf %130, %131 : vector<2x32xf32>
    %133 = arith.negf %132 : vector<2x32xf32>
    %134 = math.exp %133 : vector<2x32xf32>
    %cst_44 = arith.constant 1.000000e+00 : f32
    %135 = vector.broadcast %cst_44 : f32 to vector<2x32xf32>
    %136 = arith.addf %135, %134 : vector<2x32xf32>
    %137 = arith.divf %135, %136 : vector<2x32xf32>
    %138 = vector.extract_strided_slice %121 {offsets = [0, 64], sizes = [2, 32], strides = [1, 1]} : vector<2x96xf32> to vector<2x32xf32>
    %139 = vector.extract_strided_slice %118 {offsets = [0, 64], sizes = [2, 32], strides = [1, 1]} : vector<2x96xf32> to vector<2x32xf32>
    %140 = vector.broadcast %20 : vector<1x32xf32> to vector<2x32xf32>
    %141 = arith.addf %139, %140 : vector<2x32xf32>
    %142 = arith.mulf %129, %141 : vector<2x32xf32>
    %143 = arith.addf %138, %142 : vector<2x32xf32>
    %144 = math.tanh %143 : vector<2x32xf32>
    %cst_45 = arith.constant 1.000000e+00 : f32
    %145 = vector.broadcast %cst_45 : f32 to vector<2x32xf32>
    %146 = arith.subf %145, %137 : vector<2x32xf32>
    %147 = arith.mulf %146, %144 : vector<2x32xf32>
    %148 = arith.mulf %137, %117 : vector<2x32xf32>
    %149 = arith.addf %147, %148 : vector<2x32xf32>
    %c4_i32 = arith.constant 4 : i32
    %c0_46 = arith.constant 0 : index
    %c0_47 = arith.constant 0 : index
    %150 = vector.load %arg11[%c0_46, %c0_47] : memref<2x32xf32, #tpu.memory_space<vmem>>, vector<2x32xf32>
    tpu.vector_store %arg11[%c0_46, %c0_47], %149 {strides = array<i32>} : memref<2x32xf32, #tpu.memory_space<vmem>>, vector<2x32xf32>,
    %c1_i32_48 = arith.constant 1 : i32
    %151 = arith.cmpi eq, %arg1, %c1_i32_48 : i32
    %152 = arith.extui %151 : i1 to i32
    %c0_i32_49 = arith.constant 0 : i32
    %153 = arith.cmpi ne, %152, %c0_i32_49 : i32
    scf.if %153 {
      %c0_50 = arith.constant 0 : index
      %c0_51 = arith.constant 0 : index
      %154 = vector.load %arg11[%c0_50, %c0_51] : memref<2x32xf32, #tpu.memory_space<vmem>>, vector<2x32xf32>
      %c0_52 = arith.constant 0 : index
      %c0_53 = arith.constant 0 : index
      %155 = vector.load %arg7[%c0_52, %c0_53] : memref<1x32xf32, #tpu.memory_space<vmem>>, vector<1x32xf32>
      %156 = vector.broadcast %155 : vector<1x32xf32> to vector<2x32xf32>
      %157 = arith.mulf %154, %156 : vector<2x32xf32>
      %cst_54 = arith.constant dense<0.000000e+00> : vector<2xf32>
      %158 = vector.multi_reduction <add>, %157, %cst_54 [1] : vector<2x32xf32> to vector<2xf32>
      %159 = vector.shape_cast %158 : vector<2xf32> to vector<2x1xf32>
      %c0_55 = arith.constant 0 : index
      %c0_56 = arith.constant 0 : index
      %160 = vector.load %arg12[%c0_55, %c0_56] : memref<2x4xf32, #tpu.memory_space<vmem>>, vector<2x4xf32>
      %c0_57 = arith.constant 0 : index
      %c0_58 = arith.constant 0 : index
      %161 = vector.load %arg8[%c0_57, %c0_58] : memref<1x4xf32, #tpu.memory_space<vmem>>, vector<1x4xf32>
      %162 = vector.broadcast %161 : vector<1x4xf32> to vector<2x4xf32>
      %163 = arith.mulf %160, %162 : vector<2x4xf32>
      %cst_59 = arith.constant dense<0.000000e+00> : vector<2xf32>
      %164 = vector.multi_reduction <add>, %163, %cst_59 [1] : vector<2x4xf32> to vector<2xf32>
      %165 = vector.shape_cast %164 : vector<2xf32> to vector<2x1xf32>
      %166 = arith.addf %159, %165 : vector<2x1xf32>
      %c0_60 = arith.constant 0 : index
      %c0_61 = arith.constant 0 : index
      %167 = vector.load %arg9[%c0_60, %c0_61] : memref<1x1xf32, #tpu.memory_space<vmem>>, vector<1x1xf32>
      %168 = vector.broadcast %167 : vector<1x1xf32> to vector<2x1xf32>
      %169 = arith.addf %166, %168 : vector<2x1xf32>
      %c0_62 = arith.constant 0 : index
      %c0_63 = arith.constant 0 : index
      %170 = vector.load %arg10[%c0_62, %c0_63] : memref<2x1xf32, #tpu.memory_space<vmem>>, vector<2x1xf32>
      tpu.vector_store %arg10[%c0_62, %c0_63], %169 {strides = array<i32>} : memref<2x1xf32, #tpu.memory_space<vmem>>, vector<2x1xf32>,
    } else {
    }
    return
  }
  func.func @transform_0(%arg0: i32, %arg1: i32) -> (i32, i32, i32) {
    %c0_i32 = arith.constant 0 : i32
    %c0_i32_0 = arith.constant 0 : i32
    return %arg1, %arg0, %c0_i32 : i32, i32, i32
  }
  func.func @transform_1(%arg0: i32, %arg1: i32) -> (i32, i32) {
    %c0_i32 = arith.constant 0 : i32
    %c0_i32_0 = arith.constant 0 : i32
    %c0_i32_1 = arith.constant 0 : i32
    return %c0_i32, %c0_i32_0 : i32, i32
  }
  func.func @transform_2(%arg0: i32, %arg1: i32) -> (i32, i32) {
    %c0_i32 = arith.constant 0 : i32
    %c0_i32_0 = arith.constant 0 : i32
    %c0_i32_1 = arith.constant 0 : i32
    return %c0_i32, %c0_i32_0 : i32, i32
  }
  func.func @transform_3(%arg0: i32, %arg1: i32) -> (i32, i32) {
    %c0_i32 = arith.constant 0 : i32
    %c0_i32_0 = arith.constant 0 : i32
    %c0_i32_1 = arith.constant 0 : i32
    return %c0_i32, %c0_i32_0 : i32, i32
  }
  func.func @transform_4(%arg0: i32, %arg1: i32) -> (i32, i32) {
    %c0_i32 = arith.constant 0 : i32
    %c0_i32_0 = arith.constant 0 : i32
    %c0_i32_1 = arith.constant 0 : i32
    return %c0_i32, %c0_i32_0 : i32, i32
  }
  func.func @transform_5(%arg0: i32, %arg1: i32) -> (i32, i32) {
    %c0_i32 = arith.constant 0 : i32
    %c0_i32_0 = arith.constant 0 : i32
    %c0_i32_1 = arith.constant 0 : i32
    return %c0_i32, %c0_i32_0 : i32, i32
  }
  func.func @transform_6(%arg0: i32, %arg1: i32) -> (i32, i32) {
    %c0_i32 = arith.constant 0 : i32
    %c0_i32_0 = arith.constant 0 : i32
    %c0_i32_1 = arith.constant 0 : i32
    return %c0_i32, %c0_i32_0 : i32, i32
  }
  func.func @transform_7(%arg0: i32, %arg1: i32) -> (i32, i32) {
    %c0_i32 = arith.constant 0 : i32
    %c0_i32_0 = arith.constant 0 : i32
    %c0_i32_1 = arith.constant 0 : i32
    return %c0_i32, %c0_i32_0 : i32, i32
  }
  func.func @transform_8(%arg0: i32, %arg1: i32) -> (i32, i32) {
    %c0_i32 = arith.constant 0 : i32
    %c0_i32_0 = arith.constant 0 : i32
    return %arg0, %c0_i32 : i32, i32
  }
}

</mosaic_0001>

<llo_original>
// kernel: tpu_custom_call.1
$region0: #{tpu_custom_call.1}
  #allocation0 [shape = 'u32[]', space=smem, size = 0x4, offset = 0x4, fixed_abs, tag = 'smem constant byte address 0x4 - core index']
  #allocation1 [shape = 'u32[72,128]{1,0:T(1,128)}', space=vmem, size = 0x9000, scoped, tag = 'internal scratch']
  #allocation2 [shape = 'f32[2,32]{1,0:T(2,128)}', space=vmem, size = 0x400, scoped, tag = 'scratch operand']
  #allocation3 [shape = 'f32[2,4]{1,0:T(2,128)}', space=vmem, size = 0x400, scoped, tag = 'scratch operand']
  #allocation4 [shape = 'f32[4,2,96]{2,1,0:T(2,128)}', space=vmem, size = 0x1000, scoped, tag = 'scratch operand']
  #allocation5 [shape = 'f32[1,1]{1,0:T(1,128)S(1)}', space=vmem, size = 0x200, scoped, tag = 'scoped memory for tpu_custom_call.1']
  %s0 = inlined_call_operand.vmem [shape: bf16[8,2,128], index: 0, kind: input, shape index: {}]
  %s1 = inlined_call_operand.vmem [shape: bf16[128,100], index: 1, kind: input, shape index: {}]
  %s2 = inlined_call_operand.vmem [shape: f32[1,100], index: 2, kind: input, shape index: {}]
  %s3 = inlined_call_operand.vmem [shape: f32[32,96], index: 3, kind: input, shape index: {}]
  %s4 = inlined_call_operand.vmem [shape: f32[1,32], index: 4, kind: input, shape index: {}]
  %s5 = inlined_call_operand.vmem [shape: f32[1,32], index: 5, kind: input, shape index: {}]
  %s6 = inlined_call_operand.vmem [shape: f32[1,4], index: 6, kind: input, shape index: {}]
  %s7 = inlined_call_operand.<no memory space> [shape: f32[1,1], index: 7, kind: input, shape index: {}]
  %s8 = inlined_call_operand.vmem [shape: f32[2,1], index: 8, kind: output, shape index: {}]
  %s9 = sld [smem:[#allocation0]]
  $region73: #{tpu_custom_call.1} parent=0
    _
  %s11 = ssub.s32 1, %s9
  %s12 = scalar_select 0, %s11, %s9
  %v13 = vstv %s7
  %14 = vst [vmem:[#allocation5] sm:$0x1] %v13
  loop: start=0, step=1, limit=4
  $region2: #{tpu_custom_call.1} parent=0 // loop_pre_header
    _
  $region3: #{tpu_custom_call.1} parent=0 // loop_header
    %s16 = sphi 0, %s20
    %p17 = scmp.ge.s32.totalorder %s16, 4
    %s23 = sphi 0, %s35
    %s24 = sphi 0, %s31
    %s25 = sphi 0, %s23
    %s26 = sphi 0, %s24
    %s27 = sphi 0, %s25
    %s28 = sphi 0, %s26
    %s40 = sphi 0, %s42
    %s43 = sphi 0, %s40
    %s44 = sphi 0, %s43
    %s60 = sphi 0, %s44
    %s64 = sphi 0, %s64
    %s66 = sphi 0, %s64
    %s67 = sphi 0, %s66
    %s81 = sphi 0, %s67
    %s85 = sphi 0, %s85
    %s87 = sphi 0, %s85
    %s88 = sphi 0, %s87
    %s102 = sphi 0, %s88
    %s106 = sphi 0, %s106
    %s108 = sphi 0, %s106
    %s109 = sphi 0, %s108
    %s123 = sphi 0, %s109
    %s127 = sphi 0, %s127
    %s129 = sphi 0, %s127
    %s130 = sphi 0, %s129
    %s144 = sphi 0, %s130
    %s148 = sphi 0, %s148
    %s150 = sphi 0, %s148
    %s151 = sphi 0, %s150
    %s165 = sphi 0, %s151
    %s169 = sphi 0, %s169
    %s171 = sphi 0, %s169
    %s172 = sphi 0, %s171
    %s186 = sphi 0, %s172
    %s190 = sphi 0, %s190
    %s192 = sphi 0, %s190
    %s193 = sphi 0, %s192
    %s207 = sphi 0, %s193
    %s213 = sphi 0, %s215
    %s216 = sphi 0, %s213
    %s217 = sphi 0, %s216
    %s233 = sphi 0, %s217
  $region4: #{tpu_custom_call.1} parent=0 // loop_header_branch
    %19 = sbr.rel (%p17) target = $region8
  $region5: #{tpu_custom_call.1} parent=0 // loop_body
    %s21 = ssub.s32 %s16, 1
    %s22 = ssub.s32 %s16, 2
    %s29 = sadd.s32 1, %s24
    %p30 = scmp.ge.s32.totalorder %s29, 2
    %s31 = scalar_select %p30, 0, %s29
    %s32 = sadd.s32 1, %s23
    %s33 = scalar_select %p30, %s32, %s23
    %p34 = scmp.ge.s32.totalorder %s33, 1
    %s35 = scalar_select %p34, 0, %s33
    %s36 = ssub.s32 %s24, %s31
    %s37 = ssub.s32 %s23, %s35
    %s38 = sor.u32 %s36, %s37
    %p39 = scmp.eq.s32.totalorder %s38, 0
    %s41 = sadd.s32 %s40, 1
    %s42 = scalar_select %p39, %s40, %s41
    %p45 = pneg %p39
    %p46 = scmp.eq.s32.totalorder %s16, 1
    %p47 = por %p45, %p46
    %p48 = scmp.ne.s32.totalorder %s40, %s43
    %p49 = scmp.eq.s32.totalorder %s16, 0
    %p50 = por %p48, %p49
    %p51 = scmp.ne.s32.totalorder %s40, %s43
    %p52 = scmp.eq.s32.totalorder %s21, 1
    %p53 = por %p51, %p52
    %p54 = scmp.ne.s32.totalorder %s43, %s44
    %p55 = scmp.eq.s32.totalorder %s21, 0
    %p56 = por %p54, %p55
    %p57 = scmp.ne.s32.totalorder %s43, %s44
    %p58 = scmp.eq.s32.totalorder %s22, 1
    %p59 = por %p57, %p58
    %p61 = scmp.ne.s32.totalorder %s44, %s60
    %p62 = scmp.eq.s32.totalorder %s22, 0
    %p63 = por %p61, %p62
    %s65 = sadd.s32 %s64, 1
    %p68 = scmp.eq.s32.totalorder %s16, 1
    %p69 = scmp.ne.s32.totalorder %s64, %s66
    %p70 = scmp.eq.s32.totalorder %s16, 0
    %p71 = por %p69, %p70
    %p72 = scmp.ne.s32.totalorder %s64, %s66
    %p73 = scmp.eq.s32.totalorder %s21, 1
    %p74 = por %p72, %p73
    %p75 = scmp.ne.s32.totalorder %s66, %s67
    %p76 = scmp.eq.s32.totalorder %s21, 0
    %p77 = por %p75, %p76
    %p78 = scmp.ne.s32.totalorder %s66, %s67
    %p79 = scmp.eq.s32.totalorder %s22, 1
    %p80 = por %p78, %p79
    %p82 = scmp.ne.s32.totalorder %s67, %s81
    %p83 = scmp.eq.s32.totalorder %s22, 0
    %p84 = por %p82, %p83
    %s86 = sadd.s32 %s85, 1
    %p89 = scmp.eq.s32.totalorder %s16, 1
    %p90 = scmp.ne.s32.totalorder %s85, %s87
    %p91 = scmp.eq.s32.totalorder %s16, 0
    %p92 = por %p90, %p91
    %p93 = scmp.ne.s32.totalorder %s85, %s87
    %p94 = scmp.eq.s32.totalorder %s21, 1
    %p95 = por %p93, %p94
    %p96 = scmp.ne.s32.totalorder %s87, %s88
    %p97 = scmp.eq.s32.totalorder %s21, 0
    %p98 = por %p96, %p97
    %p99 = scmp.ne.s32.totalorder %s87, %s88
    %p100 = scmp.eq.s32.totalorder %s22, 1
    %p101 = por %p99, %p100
    %p103 = scmp.ne.s32.totalorder %s88, %s102
    %p104 = scmp.eq.s32.totalorder %s22, 0
    %p105 = por %p103, %p104
    %s107 = sadd.s32 %s106, 1
    %p110 = scmp.eq.s32.totalorder %s16, 1
    %p111 = scmp.ne.s32.totalorder %s106, %s108
    %p112 = scmp.eq.s32.totalorder %s16, 0
    %p113 = por %p111, %p112
    %p114 = scmp.ne.s32.totalorder %s106, %s108
    %p115 = scmp.eq.s32.totalorder %s21, 1
    %p116 = por %p114, %p115
    %p117 = scmp.ne.s32.totalorder %s108, %s109
    %p118 = scmp.eq.s32.totalorder %s21, 0
    %p119 = por %p117, %p118
    %p120 = scmp.ne.s32.totalorder %s108, %s109
    %p121 = scmp.eq.s32.totalorder %s22, 1
    %p122 = por %p120, %p121
    %p124 = scmp.ne.s32.totalorder %s109, %s123
    %p125 = scmp.eq.s32.totalorder %s22, 0
    %p126 = por %p124, %p125
    %s128 = sadd.s32 %s127, 1
    %p131 = scmp.eq.s32.totalorder %s16, 1
    %p132 = scmp.ne.s32.totalorder %s127, %s129
    %p133 = scmp.eq.s32.totalorder %s16, 0
    %p134 = por %p132, %p133
    %p135 = scmp.ne.s32.totalorder %s127, %s129
    %p136 = scmp.eq.s32.totalorder %s21, 1
    %p137 = por %p135, %p136
    %p138 = scmp.ne.s32.totalorder %s129, %s130
    %p139 = scmp.eq.s32.totalorder %s21, 0
    %p140 = por %p138, %p139
    %p141 = scmp.ne.s32.totalorder %s129, %s130
    %p142 = scmp.eq.s32.totalorder %s22, 1
    %p143 = por %p141, %p142
    %p145 = scmp.ne.s32.totalorder %s130, %s144
    %p146 = scmp.eq.s32.totalorder %s22, 0
    %p147 = por %p145, %p146
    %s149 = sadd.s32 %s148, 1
    %p152 = scmp.eq.s32.totalorder %s16, 1
    %p153 = scmp.ne.s32.totalorder %s148, %s150
    %p154 = scmp.eq.s32.totalorder %s16, 0
    %p155 = por %p153, %p154
    %p156 = scmp.ne.s32.totalorder %s148, %s150
    %p157 = scmp.eq.s32.totalorder %s21, 1
    %p158 = por %p156, %p157
    %p159 = scmp.ne.s32.totalorder %s150, %s151
    %p160 = scmp.eq.s32.totalorder %s21, 0
    %p161 = por %p159, %p160
    %p162 = scmp.ne.s32.totalorder %s150, %s151
    %p163 = scmp.eq.s32.totalorder %s22, 1
    %p164 = por %p162, %p163
    %p166 = scmp.ne.s32.totalorder %s151, %s165
    %p167 = scmp.eq.s32.totalorder %s22, 0
    %p168 = por %p166, %p167
    %s170 = sadd.s32 %s169, 1
    %p173 = scmp.eq.s32.totalorder %s16, 1
    %p174 = scmp.ne.s32.totalorder %s169, %s171
    %p175 = scmp.eq.s32.totalorder %s16, 0
    %p176 = por %p174, %p175
    %p177 = scmp.ne.s32.totalorder %s169, %s171
    %p178 = scmp.eq.s32.totalorder %s21, 1
    %p179 = por %p177, %p178
    %p180 = scmp.ne.s32.totalorder %s171, %s172
    %p181 = scmp.eq.s32.totalorder %s21, 0
    %p182 = por %p180, %p181
    %p183 = scmp.ne.s32.totalorder %s171, %s172
    %p184 = scmp.eq.s32.totalorder %s22, 1
    %p185 = por %p183, %p184
    %p187 = scmp.ne.s32.totalorder %s172, %s186
    %p188 = scmp.eq.s32.totalorder %s22, 0
    %p189 = por %p187, %p188
    %s191 = sadd.s32 %s190, 1
    %p194 = scmp.eq.s32.totalorder %s16, 1
    %p195 = scmp.ne.s32.totalorder %s190, %s192
    %p196 = scmp.eq.s32.totalorder %s16, 0
    %p197 = por %p195, %p196
    %p198 = scmp.ne.s32.totalorder %s190, %s192
    %p199 = scmp.eq.s32.totalorder %s21, 1
    %p200 = por %p198, %p199
    %p201 = scmp.ne.s32.totalorder %s192, %s193
    %p202 = scmp.eq.s32.totalorder %s21, 0
    %p203 = por %p201, %p202
    %p204 = scmp.ne.s32.totalorder %s192, %s193
    %p205 = scmp.eq.s32.totalorder %s22, 1
    %p206 = por %p204, %p205
    %p208 = scmp.ne.s32.totalorder %s193, %s207
    %p209 = scmp.eq.s32.totalorder %s22, 0
    %p210 = por %p208, %p209
    %s211 = ssub.s32 %s23, %s35
    %p212 = scmp.eq.s32.totalorder %s211, 0
    %s214 = sadd.s32 %s213, 1
    %s215 = scalar_select %p212, %s213, %s214
    %p218 = pneg %p212
    %p219 = scmp.eq.s32.totalorder %s16, 1
    %p220 = por %p218, %p219
    %p221 = scmp.ne.s32.totalorder %s213, %s216
    %p222 = scmp.eq.s32.totalorder %s16, 0
    %p223 = por %p221, %p222
    %p224 = scmp.ne.s32.totalorder %s213, %s216
    %p225 = scmp.eq.s32.totalorder %s21, 1
    %p226 = por %p224, %p225
    %p227 = scmp.ne.s32.totalorder %s216, %s217
    %p228 = scmp.eq.s32.totalorder %s21, 0
    %p229 = por %p227, %p228
    %p230 = scmp.ne.s32.totalorder %s216, %s217
    %p231 = scmp.eq.s32.totalorder %s22, 1
    %p232 = por %p230, %p231
    %p234 = scmp.ne.s32.totalorder %s217, %s233
    %p235 = scmp.eq.s32.totalorder %s22, 0
    %p236 = por %p234, %p235
    %p237 = scmp.le.s32.totalorder 1, %s16
    %p238 = scmp.lt.s32.totalorder %s16, 3
    %p239 = pnand %p237, %p238
    %p240 = pneg %p239
    // Predicated region
    $region9: #{tpu_custom_call.1} parent=5 // pred_check
      _
    $region10: #{tpu_custom_call.1} parent=5 // pred_check_branch
      %242 = sbr.rel (%p239) target = $region12
    $region11: #{tpu_custom_call.1} parent=5 // pred_region
      %s243 = ssub.s32 %s16, 1
      // Predicated region
      $region13: #{tpu_custom_call.1} parent=11 // pred_check
        %p244 = pneg %p77
      $region14: #{tpu_custom_call.1} parent=11 // pred_check_branch
        %246 = sbr.rel (%p244) target = $region16
      $region15: #{tpu_custom_call.1} parent=11 // pred_region
        _
      $region16: #{tpu_custom_call.1} parent=11 // pred_fallthru
        _
      // Predicated region
      $region17: #{tpu_custom_call.1} parent=11 // pred_check
        %p247 = pneg %p98
      $region18: #{tpu_custom_call.1} parent=11 // pred_check_branch
        %249 = sbr.rel (%p247) target = $region20
      $region19: #{tpu_custom_call.1} parent=11 // pred_region
        _
      $region20: #{tpu_custom_call.1} parent=11 // pred_fallthru
        _
      // Predicated region
      $region21: #{tpu_custom_call.1} parent=11 // pred_check
        %p250 = pneg %p119
      $region22: #{tpu_custom_call.1} parent=11 // pred_check_branch
        %252 = sbr.rel (%p250) target = $region24
      $region23: #{tpu_custom_call.1} parent=11 // pred_region
        _
      $region24: #{tpu_custom_call.1} parent=11 // pred_fallthru
        _
      // Predicated region
      $region25: #{tpu_custom_call.1} parent=11 // pred_check
        %p253 = pneg %p140
      $region26: #{tpu_custom_call.1} parent=11 // pred_check_branch
        %255 = sbr.rel (%p253) target = $region28
      $region27: #{tpu_custom_call.1} parent=11 // pred_region
        _
      $region28: #{tpu_custom_call.1} parent=11 // pred_fallthru
        _
      // Predicated region
      $region29: #{tpu_custom_call.1} parent=11 // pred_check
        %p256 = pneg %p161
      $region30: #{tpu_custom_call.1} parent=11 // pred_check_branch
        %258 = sbr.rel (%p256) target = $region32
      $region31: #{tpu_custom_call.1} parent=11 // pred_region
        _
      $region32: #{tpu_custom_call.1} parent=11 // pred_fallthru
        _
      // Predicated region
      $region33: #{tpu_custom_call.1} parent=11 // pred_check
        %p259 = pneg %p182
      $region34: #{tpu_custom_call.1} parent=11 // pred_check_branch
        %261 = sbr.rel (%p259) target = $region36
      $region35: #{tpu_custom_call.1} parent=11 // pred_region
        _
      $region36: #{tpu_custom_call.1} parent=11 // pred_fallthru
        _
      // Predicated region
      $region37: #{tpu_custom_call.1} parent=11 // pred_check
        %p262 = pneg %p203
      $region38: #{tpu_custom_call.1} parent=11 // pred_check_branch
        %264 = sbr.rel (%p262) target = $region40
      $region39: #{tpu_custom_call.1} parent=11 // pred_region
        _
      $region40: #{tpu_custom_call.1} parent=11 // pred_fallthru
        _
    $region12: #{tpu_custom_call.1} parent=5 // pred_fallthru
      _
    %p265 = scmp.lt.s32.totalorder %s16, 2
    // Predicated region
    $region41: #{tpu_custom_call.1} parent=5 // pred_check
      %p266 = pneg %p265
    $region42: #{tpu_custom_call.1} parent=5 // pred_check_branch
      %268 = sbr.rel (%p266) target = $region44
    $region43: #{tpu_custom_call.1} parent=5 // pred_region
      // Predicated region
      $region45: #{tpu_custom_call.1} parent=43 // pred_check
        %p269 = pneg %p50
      $region46: #{tpu_custom_call.1} parent=43 // pred_check_branch
        %271 = sbr.rel (%p269) target = $region48
      $region47: #{tpu_custom_call.1} parent=43 // pred_region
        %s272 = smul.u32 4, %s24
        %p273 = scmp.lt.s32.totalorder %s272, 7
        %s274 = scalar_select %p273, %s272, 7
        %p275 = scmp.lt.s32.totalorder %s23, 0
        %s276 = scalar_select %p275, %s23, 0
        %s277 = sadd.s32 %s276, %s274
        %s278 = scalar_lea.vmem %s0, %s277
        %s279 = smul.u32 4, %s24
      $region48: #{tpu_custom_call.1} parent=43 // pred_fallthru
        _
    $region44: #{tpu_custom_call.1} parent=5 // pred_fallthru
      _
    %p280 = scmp.le.s32.totalorder 1, %s16
    %p281 = scmp.lt.s32.totalorder %s16, 3
    %p282 = pnand %p280, %p281
    %p283 = pneg %p282
    // Predicated region
    $region49: #{tpu_custom_call.1} parent=5 // pred_check
      _
    $region50: #{tpu_custom_call.1} parent=5 // pred_check_branch
      %285 = sbr.rel (%p282) target = $region52
    $region51: #{tpu_custom_call.1} parent=5 // pred_region
      %s286 = ssub.s32 %s16, 1
      %s287 = smul.u32 4, %s26
      %p288 = scmp.lt.s32.totalorder %s287, 7
      %s289 = scalar_select %p288, %s287, 7
      %p290 = scmp.lt.s32.totalorder %s25, 0
      %s291 = scalar_select %p290, %s25, 0
      %s292 = sadd.s32 %s291, %s289
      %s293 = scalar_lea.vmem %s0, %s292
      %p294 = pneg %p56
      %p295 = pneg %p53
      %p296 = pneg %p77
      %p297 = pneg %p74
      %p298 = pneg %p98
      %p299 = pneg %p95
      %p300 = pneg %p119
      %p301 = pneg %p116
      %p302 = pneg %p140
      %p303 = pneg %p137
      %p304 = pneg %p161
      %p305 = pneg %p158
      %p306 = pneg %p182
      %p307 = pneg %p179
      %p308 = pneg %p203
      %p309 = pneg %p200
      %p310 = pneg %p229
      %p311 = pneg %p226
      %p312 = scmp.lt.s32.totalorder %s25, 0
      %s313 = scalar_select %p312, %s25, 0
      %s314 = smul.addr %s313, 2
      %s315 = scalar_lea.vmem %s8, %s314
      %s316 = smul.u32 4, %s26
      %p317 = scmp.lt.s32.totalorder %s316, 7
      %s318 = scalar_select %p317, %s316, 7
      %p319 = scmp.lt.s32.totalorder %s25, 0
      %s320 = scalar_select %p319, %s25, 0
      %s321 = sadd.s32 %s320, %s318
      %s322 = scalar_lea.vmem %s0, %s321
      %s323 = smul.u32 4, %s26
      %p324 = scmp.lt.s32.totalorder %s25, 0
      %s325 = scalar_select %p324, %s25, 0
      %s326 = smul.addr %s325, 2
      %s327 = scalar_lea.vmem %s8, %s326
      %p328 = scmp.eq.s32.totalorder %s26, 0
      // Predicated region
      $region53: #{tpu_custom_call.1} parent=51 // pred_check
        %p329 = pneg %p328
      $region54: #{tpu_custom_call.1} parent=51 // pred_check_branch
        %331 = sbr.rel (%p329) target = $region56
      $region55: #{tpu_custom_call.1} parent=51 // pred_region
        %vm332 = vcmask 254976
        %333 = vst.msk [vmem:[#allocation2] sm:$0x3] %vm332, 0.0
        %vm334 = vcmask 25600
        %335 = vst.msk [vmem:[#allocation3] sm:$0x3] %vm334, -inf
      $region56: #{tpu_custom_call.1} parent=51 // pred_fallthru
        _
      %v336 = vld [vmem:[%s322] sm:$0x1]
      %v337 = vld [vmem:[%s322 + $0x1] sm:$0x1]
      %v338 = vld [vmem:[%s322 + $0x2] sm:$0x1]
      %v339 = vld [vmem:[%s322 + $0x3] sm:$0x1]
      %v340 = vld [vmem:[%s1] sm:$0xf]
      %v341 = vld [vmem:[%s1 + $0x4] sm:$0xf]
      %v342 = vld [vmem:[%s1 + $0x8] sm:$0xf]
      %v343 = vld [vmem:[%s1 + $0xc] sm:$0xf]
      %v344 = vld [vmem:[%s1 + $0x10] sm:$0xf]
      %v345 = vld [vmem:[%s1 + $0x14] sm:$0xf]
      %v346 = vld [vmem:[%s1 + $0x18] sm:$0xf]
      %v347 = vld [vmem:[%s1 + $0x1c] sm:$0xf]
      %v348 = vld [vmem:[%s1 + $0x20] sm:$0xf]
      %v349 = vld [vmem:[%s1 + $0x24] sm:$0xf]
      %v350 = vld [vmem:[%s1 + $0x28] sm:$0xf]
      %v351 = vld [vmem:[%s1 + $0x2c] sm:$0xf]
      %v352 = vld [vmem:[%s1 + $0x30] sm:$0xf]
      %v353 = vld [vmem:[%s1 + $0x34] sm:$0xf]
      %v354 = vld [vmem:[%s1 + $0x38] sm:$0xf]
      %v355 = vld [vmem:[%s1 + $0x3c] sm:$0xf]
      %v356 = vld [vmem:[%s2] sm:$0x1]
      %v358 = vperm.slane %v356, 0
      %361 = vst [vmem:[#allocation1] ss:$9 sm:$0xff] %v336
      %s363 = scalar_lea.vmem [#allocation1], 1
      %364 = vst [vmem:[%s363] ss:$9 sm:$0xff] %v337
      %s366 = scalar_lea.vmem [#allocation1], 2
      %367 = vst [vmem:[%s366] ss:$9 sm:$0xff] %v338
      %s369 = scalar_lea.vmem [#allocation1], 3
      %370 = vst [vmem:[%s369] ss:$9 sm:$0xff] %v339
      %v371 = vld [vmem:[#allocation1] sm:$0xff]
      %v389 = vunpack.c.l.b16 %v340
      %v390 = vunpack.c.l.b16 %v341
      %v391 = vunpack.c.l.b16 %v342
      %v392 = vunpack.c.l.b16 %v343
      %v393 = vunpack.c.l.b16 %v344
      %v394 = vunpack.c.l.b16 %v345
      %v395 = vunpack.c.l.b16 %v346
      %v396 = vunpack.c.l.b16 %v347
      %v397 = vunpack.c.l.b16 %v348
      %v398 = vunpack.c.l.b16 %v349
      %v399 = vunpack.c.l.b16 %v350
      %v400 = vunpack.c.l.b16 %v351
      %v401 = vunpack.c.l.b16 %v352
      %v402 = vunpack.c.l.b16 %v353
      %v403 = vunpack.c.l.b16 %v354
      %v404 = vunpack.c.l.b16 %v355
      %v405 = vpack.c.b16 %v390, %v389
      %v406 = vpack.c.b16 %v392, %v391
      %v407 = vpack.c.b16 %v394, %v393
      %v408 = vpack.c.b16 %v396, %v395
      %v409 = vpack.c.b16 %v398, %v397
      %v410 = vpack.c.b16 %v400, %v399
      %v411 = vpack.c.b16 %v402, %v401
      %v412 = vpack.c.b16 %v404, %v403
      %421 = vmatpush.bf16.msra.mxu0 %v412
      %422 = vmatpush.bf16.msra.mxu0 %v411
      %423 = vmatpush.bf16.msra.mxu0 %v410
      %424 = vmatpush.bf16.msra.mxu0 %v409
      %425 = vmatpush.bf16.msra.mxu0 %v408
      %426 = vmatpush.bf16.msra.mxu0 %v407
      %427 = vmatpush.bf16.msra.mxu0 %v406
      %428 = vmatpush.bf16.msra.mxu0 %v405
      %429 = vmatmul.bf16.gmra.mxu0 %v371
      %v430 = vpop.f32.mrf.mxu0
      %v431 = vadd.f32 %v358, %v430
      %v432 = vpop.f32.mrf.mxu0
      %433 = vdwg.mxu0
      %v435 = vrot.slane %v431, 2
      %v436 = vrot.slane %v431, 4
      %v437 = vrot.slane %v431, 6
      %vm441 = vcmask 779264
      %442 = vst.msk [vmem:[#allocation4] sm:$0x3] %vm441, %v431
      %443 = vst.msk [vmem:[#allocation4 + $0x2] sm:$0x3] %vm441, %v435
      %444 = vst.msk [vmem:[#allocation4 + $0x4] sm:$0x3] %vm441, %v436
      %445 = vst.msk [vmem:[#allocation4 + $0x6] sm:$0x3] %vm441, %v437
      %v446 = vld [vmem:[#allocation3] sm:$0x3]
      %vm447 = vcmask 812800
      %v448 = vsel %vm447, %v431, -inf
      %v449 = vsel %vm447, %v435, -inf
      %v450 = vsel %vm447, %v436, -inf
      %v451 = vsel %vm447, %v437, -inf
      %v452 = vmax.f32 %v448, %v449
      %v453 = vmax.f32 %v450, %v451
      %v454 = vmax.f32 %v452, %v453
      %456 = vst [vmem:[#allocation1] ss:$4 sm:$0xff] %v454
      %v457 = vld.sshfl [vmem:[#allocation1] sm:$0xff pattern:$0x73625140]
      %458 = vrot.lane.b32.xlu0 %v457, 32
      %v459 = vpop.permute.xlu0 %458
      %v461 = vmax.f32 %v446, %v459
      %vm462 = vcmask 25600
      %463 = vst.msk [vmem:[#allocation3] sm:$0x3] %vm462, %v461
      %v464 = vld [vmem:[%s3] sm:$0xff]
      %v465 = vld [vmem:[%s3 + $0x8] sm:$0xff]
      %v466 = vld [vmem:[%s3 + $0x10] sm:$0xff]
      %v467 = vld [vmem:[%s3 + $0x18] sm:$0xff]
      %v468 = vld [vmem:[%s4] sm:$0x1]
      %v469 = vld [vmem:[#allocation2] sm:$0x3]
      %vm470 = vcmask 261120
      %v472 = vsel %vm470, %v469, 0
      %474 = vmatpush.msra.mxu0 0.0
      %475 = vmatpush.msra.mxu0 0.0
      %476 = vmatpush.msra.mxu0 0.0
      %477 = vmatpush.msra.mxu0 0.0
      %478 = vmatpush.msra.mxu0 0.0
      %479 = vmatpush.msra.mxu0 0.0
      %480 = vmatpush.msra.mxu0 0.0
      %481 = vmatpush.msra.mxu0 0.0
      %482 = vmatpush.msra.mxu0 0.0
      %483 = vmatpush.msra.mxu0 0.0
      %484 = vmatpush.msra.mxu0 0.0
      %485 = vmatpush.msra.mxu0 0.0
      %486 = vmatpush.msra.mxu0 %v467
      %487 = vmatpush.msra.mxu0 %v466
      %488 = vmatpush.msra.mxu0 %v465
      %489 = vmatpush.msra.mxu0 %v464
      %490 = vmatmul.f32.gmra.mxu0 %v472
      %v491 = vpop.f32.mrf.mxu0
      %v492 = vadd.f32 0.0, %v491
      %493 = vdwg.mxu0
      %v494 = vld [vmem:[#allocation4] sm:$0x3]
      %v495 = vadd.f32 %v494, %v492
      %v496 = vxor.u32 %v495, 2147483648
      %v497 = vmul.f32 %v496, 1.442695
      %v498 = vpow.pop %v497
      %v499 = vadd.f32 %v498, 1.0
      %v500 = vrcp.pop %v499
      %v501 = vmul.f32 %v499, %v500
      %v502 = vsub.f32 1.0, %v501
      %v503 = vmul.f32 %v500, %v502
      %v504 = vadd.f32 %v500, %v503
      %vm505 = vweird.f32 %v499
      %vm506 = vweird.f32 %v500
      %vm507 = vmor %vm505, %vm506
      %v508 = vsel %vm507, %v500, %v504
      %v509 = vand.u32 2147483647, %v499
      %vm510 = vcmp.eq.f32.partialorder %v509, 8.507059e+37
      %v511 = vand.u32 %v499, 2147483648
      %v512 = vor.u32 1.1754944e-38, %v511
      %v513 = vsel %vm510, %v512, %v508
      %v514 = vmul.f32 1.0, %v513
      %v516 = vperm.slane %v468, 0
      %517 = vrot.lane.b32.xlu0 %v516, 64
      %v518 = vpop.permute.xlu0 %517
      %v520 = vadd.f32 %v492, %v518
      %522 = vrot.lane.b32.xlu0 %v520, 64
      %v523 = vpop.permute.xlu0 %522
      %v525 = vmul.f32 %v514, %v523
      %527 = vrot.lane.b32.xlu0 %v525, 64
      %v528 = vpop.permute.xlu0 %527
      %v530 = vadd.f32 %v494, %v528
      %v531 = vtanh.pop %v530
      %v532 = vsub.f32 1.0, %v514
      %534 = vrot.lane.b32.xlu0 %v531, 96
      %v535 = vpop.permute.xlu0 %534
      %v537 = vmul.f32 %v532, %v535
      %538 = vrot.lane.b32.xlu0 %v469, 32
      %v539 = vpop.permute.xlu0 %538
      %v541 = vmul.f32 %v514, %v539
      %v542 = vadd.f32 %v537, %v541
      %544 = vrot.lane.b32.xlu0 %v542, 96
      %v545 = vpop.permute.xlu0 %544
      %v546 = vsel %vm470, %v545, 0
      %548 = vmatpush.msra.mxu0 0.0
      %549 = vmatpush.msra.mxu0 0.0
      %550 = vmatpush.msra.mxu0 0.0
      %551 = vmatpush.msra.mxu0 0.0
      %552 = vmatpush.msra.mxu0 0.0
      %553 = vmatpush.msra.mxu0 0.0
      %554 = vmatpush.msra.mxu0 0.0
      %555 = vmatpush.msra.mxu0 0.0
      %556 = vmatpush.msra.mxu0 0.0
      %557 = vmatpush.msra.mxu0 0.0
      %558 = vmatpush.msra.mxu0 0.0
      %559 = vmatpush.msra.mxu0 0.0
      %560 = vmatpush.msra.mxu0 %v467
      %561 = vmatpush.msra.mxu0 %v466
      %562 = vmatpush.msra.mxu0 %v465
      %563 = vmatpush.msra.mxu0 %v464
      %564 = vmatmul.f32.gmra.mxu0 %v546
      %v565 = vpop.f32.mrf.mxu0
      %v566 = vadd.f32 0.0, %v565
      %567 = vdwg.mxu0
      %s568 = scalar_lea.vmem [#allocation4], 2
      %v569 = vld [vmem:[%s568] sm:$0x3]
      %v570 = vadd.f32 %v569, %v566
      %v571 = vxor.u32 %v570, 2147483648
      %v572 = vmul.f32 %v571, 1.442695
      %v573 = vpow.pop %v572
      %v574 = vadd.f32 %v573, 1.0
      %v575 = vrcp.pop %v574
      %v576 = vmul.f32 %v574, %v575
      %v577 = vsub.f32 1.0, %v576
      %v578 = vmul.f32 %v575, %v577
      %v579 = vadd.f32 %v575, %v578
      %vm580 = vweird.f32 %v574
      %vm581 = vweird.f32 %v575
      %vm582 = vmor %vm580, %vm581
      %v583 = vsel %vm582, %v575, %v579
      %v584 = vand.u32 2147483647, %v574
      %vm585 = vcmp.eq.f32.partialorder %v584, 8.507059e+37
      %v586 = vand.u32 %v574, 2147483648
      %v587 = vor.u32 1.1754944e-38, %v586
      %v588 = vsel %vm585, %v587, %v583
      %v589 = vmul.f32 1.0, %v588
      %v590 = vadd.f32 %v566, %v518
      %592 = vrot.lane.b32.xlu0 %v590, 64
      %v593 = vpop.permute.xlu0 %592
      %v595 = vmul.f32 %v589, %v593
      %597 = vrot.lane.b32.xlu0 %v595, 64
      %v598 = vpop.permute.xlu0 %597
      %v600 = vadd.f32 %v569, %v598
      %v601 = vtanh.pop %v600
      %v602 = vsub.f32 1.0, %v589
      %604 = vrot.lane.b32.xlu0 %v601, 96
      %v605 = vpop.permute.xlu0 %604
      %v607 = vmul.f32 %v602, %v605
      %v608 = vmul.f32 %v589, %v542
      %v609 = vadd.f32 %v607, %v608
      %611 = vrot.lane.b32.xlu0 %v609, 96
      %v612 = vpop.permute.xlu0 %611
      %v613 = vsel %vm470, %v612, 0
      %615 = vmatpush.msra.mxu0 0.0
      %616 = vmatpush.msra.mxu0 0.0
      %617 = vmatpush.msra.mxu0 0.0
      %618 = vmatpush.msra.mxu0 0.0
      %619 = vmatpush.msra.mxu0 0.0
      %620 = vmatpush.msra.mxu0 0.0
      %621 = vmatpush.msra.mxu0 0.0
      %622 = vmatpush.msra.mxu0 0.0
      %623 = vmatpush.msra.mxu0 0.0
      %624 = vmatpush.msra.mxu0 0.0
      %625 = vmatpush.msra.mxu0 0.0
      %626 = vmatpush.msra.mxu0 0.0
      %627 = vmatpush.msra.mxu0 %v467
      %628 = vmatpush.msra.mxu0 %v466
      %629 = vmatpush.msra.mxu0 %v465
      %630 = vmatpush.msra.mxu0 %v464
      %631 = vmatmul.f32.gmra.mxu0 %v613
      %v632 = vpop.f32.mrf.mxu0
      %v633 = vadd.f32 0.0, %v632
      %634 = vdwg.mxu0
      %s635 = scalar_lea.vmem [#allocation4], 4
      %v636 = vld [vmem:[%s635] sm:$0x3]
      %v637 = vadd.f32 %v636, %v633
      %v638 = vxor.u32 %v637, 2147483648
      %v639 = vmul.f32 %v638, 1.442695
      %v640 = vpow.pop %v639
      %v641 = vadd.f32 %v640, 1.0
      %v642 = vrcp.pop %v641
      %v643 = vmul.f32 %v641, %v642
      %v644 = vsub.f32 1.0, %v643
      %v645 = vmul.f32 %v642, %v644
      %v646 = vadd.f32 %v642, %v645
      %vm647 = vweird.f32 %v641
      %vm648 = vweird.f32 %v642
      %vm649 = vmor %vm647, %vm648
      %v650 = vsel %vm649, %v642, %v646
      %v651 = vand.u32 2147483647, %v641
      %vm652 = vcmp.eq.f32.partialorder %v651, 8.507059e+37
      %v653 = vand.u32 %v641, 2147483648
      %v654 = vor.u32 1.1754944e-38, %v653
      %v655 = vsel %vm652, %v654, %v650
      %v656 = vmul.f32 1.0, %v655
      %v657 = vadd.f32 %v633, %v518
      %659 = vrot.lane.b32.xlu0 %v657, 64
      %v660 = vpop.permute.xlu0 %659
      %v662 = vmul.f32 %v656, %v660
      %664 = vrot.lane.b32.xlu0 %v662, 64
      %v665 = vpop.permute.xlu0 %664
      %v667 = vadd.f32 %v636, %v665
      %v668 = vtanh.pop %v667
      %v669 = vsub.f32 1.0, %v656
      %671 = vrot.lane.b32.xlu0 %v668, 96
      %v672 = vpop.permute.xlu0 %671
      %v674 = vmul.f32 %v669, %v672
      %v675 = vmul.f32 %v656, %v609
      %v676 = vadd.f32 %v674, %v675
      %678 = vrot.lane.b32.xlu0 %v676, 96
      %v679 = vpop.permute.xlu0 %678
      %v680 = vsel %vm470, %v679, 0
      %682 = vmatpush.msra.mxu0 0.0
      %683 = vmatpush.msra.mxu0 0.0
      %684 = vmatpush.msra.mxu0 0.0
      %685 = vmatpush.msra.mxu0 0.0
      %686 = vmatpush.msra.mxu0 0.0
      %687 = vmatpush.msra.mxu0 0.0
      %688 = vmatpush.msra.mxu0 0.0
      %689 = vmatpush.msra.mxu0 0.0
      %690 = vmatpush.msra.mxu0 0.0
      %691 = vmatpush.msra.mxu0 0.0
      %692 = vmatpush.msra.mxu0 0.0
      %693 = vmatpush.msra.mxu0 0.0
      %694 = vmatpush.msra.mxu0 %v467
      %695 = vmatpush.msra.mxu0 %v466
      %696 = vmatpush.msra.mxu0 %v465
      %697 = vmatpush.msra.mxu0 %v464
      %698 = vmatmul.f32.gmra.mxu0 %v680
      %v699 = vpop.f32.mrf.mxu0
      %v700 = vadd.f32 0.0, %v699
      %701 = vdwg.mxu0
      %s702 = scalar_lea.vmem [#allocation4], 6
      %v703 = vld [vmem:[%s702] sm:$0x3]
      %v704 = vadd.f32 %v703, %v700
      %v705 = vxor.u32 %v704, 2147483648
      %v706 = vmul.f32 %v705, 1.442695
      %v707 = vpow.pop %v706
      %v708 = vadd.f32 %v707, 1.0
      %v709 = vrcp.pop %v708
      %v710 = vmul.f32 %v708, %v709
      %v711 = vsub.f32 1.0, %v710
      %v712 = vmul.f32 %v709, %v711
      %v713 = vadd.f32 %v709, %v712
      %vm714 = vweird.f32 %v708
      %vm715 = vweird.f32 %v709
      %vm716 = vmor %vm714, %vm715
      %v717 = vsel %vm716, %v709, %v713
      %v718 = vand.u32 2147483647, %v708
      %vm719 = vcmp.eq.f32.partialorder %v718, 8.507059e+37
      %v720 = vand.u32 %v708, 2147483648
      %v721 = vor.u32 1.1754944e-38, %v720
      %v722 = vsel %vm719, %v721, %v717
      %v723 = vmul.f32 1.0, %v722
      %v724 = vadd.f32 %v700, %v518
      %726 = vrot.lane.b32.xlu0 %v724, 64
      %v727 = vpop.permute.xlu0 %726
      %v729 = vmul.f32 %v723, %v727
      %731 = vrot.lane.b32.xlu0 %v729, 64
      %v732 = vpop.permute.xlu0 %731
      %v734 = vadd.f32 %v703, %v732
      %v735 = vtanh.pop %v734
      %v736 = vsub.f32 1.0, %v723
      %738 = vrot.lane.b32.xlu0 %v735, 96
      %v739 = vpop.permute.xlu0 %738
      %v741 = vmul.f32 %v736, %v739
      %v742 = vmul.f32 %v723, %v676
      %v743 = vadd.f32 %v741, %v742
      %745 = vrot.lane.b32.xlu0 %v743, 96
      %v746 = vpop.permute.xlu0 %745
      %vm748 = vcmask 254976
      %749 = vst.msk [vmem:[#allocation2] sm:$0x3] %vm748, %v746
      %p750 = scmp.eq.s32.totalorder %s26, 1
      // Predicated region
      $region57: #{tpu_custom_call.1} parent=51 // pred_check
        %p751 = pneg %p750
      $region58: #{tpu_custom_call.1} parent=51 // pred_check_branch
        %753 = sbr.rel (%p751) target = $region60
      $region59: #{tpu_custom_call.1} parent=51 // pred_region
        %v754 = vld [vmem:[#allocation2] sm:$0x3]
        %v755 = vld [vmem:[%s5] sm:$0x1]
        %v757 = vperm.slane %v755, 0
        %v759 = vmul.f32 %v754, %v757
        %v760 = vsel %vm748, %v759, 0.0
        %761 = vadd.xlane.f32.xlu0 %v760
        %v762 = vpop.xlane.xlu0 %761
        %v763 = vld [vmem:[#allocation3] sm:$0x3]
        %v764 = vld [vmem:[%s6] sm:$0x1]
        %v766 = vperm.slane %v764, 0
        %v768 = vmul.f32 %v763, %v766
        %v769 = vsel %vm462, %v768, 0.0
        %770 = vadd.xlane.f32.xlu0 %v769
        %v771 = vpop.xlane.xlu0 %770
        %v772 = vadd.f32 %v762, %v771
        %v773 = vld [vmem:[#allocation5] sm:$0x1]
        %v775 = vperm.slane %v773, 0
        %v777 = vadd.f32 %v772, %v775
        %vm778 = vcmask 1024
        %779 = vst.msk [vmem:[%s327] sm:$0x3] %vm778, %v777
      $region60: #{tpu_custom_call.1} parent=51 // pred_fallthru
        _
      %p780 = scmp.lt.s32.totalorder %s25, 0
      %s781 = scalar_select %p780, %s25, 0
      %s782 = smul.addr %s781, 2
      %s783 = scalar_lea.vmem %s8, %s782
      // Predicated region
      $region61: #{tpu_custom_call.1} parent=51 // pred_check
        %p784 = pneg %p226
      $region62: #{tpu_custom_call.1} parent=51 // pred_check_branch
        %786 = sbr.rel (%p784) target = $region64
      $region63: #{tpu_custom_call.1} parent=51 // pred_region
        _
      $region64: #{tpu_custom_call.1} parent=51 // pred_fallthru
        _
      // Predicated region
      $region65: #{tpu_custom_call.1} parent=51 // pred_check
        %p787 = pneg %p226
      $region66: #{tpu_custom_call.1} parent=51 // pred_check_branch
        %789 = sbr.rel (%p787) target = $region68
      $region67: #{tpu_custom_call.1} parent=51 // pred_region
        %p790 = scmp.lt.s32.totalorder %s25, 0
        %s791 = scalar_select %p790, %s25, 0
        %s792 = smul.addr %s791, 2
        %s793 = scalar_lea.vmem %s8, %s792
      $region68: #{tpu_custom_call.1} parent=51 // pred_fallthru
        _
    $region52: #{tpu_custom_call.1} parent=5 // pred_fallthru
      _
    %p794 = scmp.le.s32.totalorder 2, %s16
    // Predicated region
    $region69: #{tpu_custom_call.1} parent=5 // pred_check
      %p795 = pneg %p794
    $region70: #{tpu_custom_call.1} parent=5 // pred_check_branch
      %797 = sbr.rel (%p795) target = $region72
    $region71: #{tpu_custom_call.1} parent=5 // pred_region
      %s798 = ssub.s32 %s16, 2
    $region72: #{tpu_custom_call.1} parent=5 // pred_fallthru
      _
  $region6: #{tpu_custom_call.1} parent=0 // loop_footer
    %s20 = sadd.s32 1, %s16
  $region7: #{tpu_custom_call.1} parent=0 // loop_footer_branch
    %15 = sbr.rel target = $region3
  $region8: #{tpu_custom_call.1} parent=0 // loop_exit
    _

</llo_original>
